<compile_context>
chip_gen: v7x
topology: tpu7x:2x2x1
jax: 0.10.0
libtpu: 0.0.40
codegen_flags: <defaults>
</compile_context>

<pallas_src>
import jax
import jax.numpy as jnp
from jax.experimental import pallas as pl
from jax.experimental.pallas import tpu as pltpu


_LANE = 256             # lane-dense last dim (multiple of 128 -> unmasked vst)
_MAX_BLOCK_ROWS = 2048  # 2048 * 256 * 4 B = 2 MiB per f32 block; double-buffered
                        # in + out stays far below even v7x's 32 MiB scoped VMEM.


def _normalize_kernel(params_ref, x_ref, o_ref):
    """One lane-dense block: o = (x - mean) * inv_std.

    params_ref: SMEM (2,) f32 = [mean, 1/std]  (scalar reads)
    x_ref:      VMEM (block_rows, _LANE)
    o_ref:      VMEM (block_rows, _LANE)
    """
    mean = params_ref[0]
    inv_std = params_ref[1]
    o_ref[...] = ((x_ref[...] - mean) * inv_std).astype(o_ref.dtype)


def _round_up(a, b):
    return ((a + b - 1) // b) * b


def normalize_one_forward(x, mean, std):
    """(x - mean) / std with scalar mean/std, matching Normalize_one.forward."""
    orig_shape = x.shape
    dtype = x.dtype
    n = x.size

    flat = x.reshape(-1)

    # Choose a lane-dense 2-D layout and a block size.
    rows_needed = pl.cdiv(n, _LANE)
    if rows_needed <= _MAX_BLOCK_ROWS:
        block_rows = max(8, _round_up(rows_needed, 8))   # sublane-aligned
        rows = block_rows                                # single grid step
    else:
        block_rows = _MAX_BLOCK_ROWS
        rows = _round_up(rows_needed, block_rows)
    n_pad = rows * _LANE
    if n_pad != n:
        flat = jnp.pad(flat, (0, n_pad - n))
    x2d = flat.reshape(rows, _LANE)

    # Scalar parameters -> SMEM: [mean, 1/std].
    mean_arr = jnp.asarray(mean, dtype=jnp.float32).reshape(())
    inv_std = (1.0 / jnp.asarray(std, dtype=jnp.float32)).reshape(())
    params = jnp.stack([mean_arr, inv_std])

    grid = (rows // block_rows,)
    out2d = pl.pallas_call(
        _normalize_kernel,
        out_shape=jax.ShapeDtypeStruct((rows, _LANE), dtype),
        grid_spec=pltpu.PrefetchScalarGridSpec(
            num_scalar_prefetch=0,
            grid=grid,
            in_specs=[
                # tiny scalar table, resident in SMEM (no per-step VMEM tile)
                pl.BlockSpec(memory_space=pltpu.MemorySpace.SMEM),
                # lane-dense input strip for grid step i
                pl.BlockSpec((block_rows, _LANE), lambda i: (i, 0)),
            ],
            out_specs=pl.BlockSpec((block_rows, _LANE), lambda i: (i, 0)),
        ),
        compiler_params=pltpu.CompilerParams(
            dimension_semantics=("parallel",)),
    )(params, x2d)

    out = out2d.reshape(-1)
    if n_pad != n:
        out = out[:n]
    return out.reshape(orig_shape)


if __name__ == "__main__":
    key = jax.random.PRNGKey(0)

    # Scalar normalization constants (as Normalize_one stores at __init__).
    mean = 0.485
    std = 0.229

    # Small input: batch=2, channels=4, spatial=16x16.
    x = jax.random.normal(key, (2, 4, 16, 16), dtype=jnp.float32)

    y = normalize_one_forward(x, mean, std)
    y = jax.block_until_ready(y)

    y_ref = (x - mean) / std
    assert y.shape == y_ref.shape
    assert jnp.allclose(y, y_ref, atol=1e-5, rtol=1e-5)

    print("KERNEL_OK")
</pallas_src>

<mosaic_0001>
module attributes {stable_mosaic.version = 11 : i64} {
  func.func @_normalize_kernel(%arg0: i32, %arg1: memref<2xf32, #tpu.memory_space<smem>>, %arg2: memref<8x256xf32, #tpu.memory_space<vmem>>, %arg3: memref<8x256xf32, #tpu.memory_space<vmem>>) attributes {dimension_semantics = [#tpu.dimension_semantics<parallel>], iteration_bounds = array<i64: 1>, scalar_prefetch = 0 : i64, scratch_operands = 0 : i64, tpu.core_type = #tpu.core_type<tc>, window_params = [{transform_indices = @transform_0, window_bounds = array<i64: 2>}, {transform_indices = @transform_1, window_bounds = array<i64: 8, 256>}, {transform_indices = @transform_2, window_bounds = array<i64: 8, 256>}]} {
    %c0 = arith.constant 0 : index
    %0 = memref.load %arg1[%c0] : memref<2xf32, #tpu.memory_space<smem>>
    %c1 = arith.constant 1 : index
    %1 = memref.load %arg1[%c1] : memref<2xf32, #tpu.memory_space<smem>>
    %c0_0 = arith.constant 0 : index
    %c0_1 = arith.constant 0 : index
    %2 = vector.load %arg2[%c0_0, %c0_1] : memref<8x256xf32, #tpu.memory_space<vmem>>, vector<8x256xf32>
    %3 = vector.broadcast %0 : f32 to vector<8x256xf32>
    %4 = arith.subf %2, %3 : vector<8x256xf32>
    %5 = vector.broadcast %1 : f32 to vector<8x256xf32>
    %6 = arith.mulf %4, %5 : vector<8x256xf32>
    %c0_2 = arith.constant 0 : index
    %c0_3 = arith.constant 0 : index
    %7 = vector.load %arg3[%c0_2, %c0_3] : memref<8x256xf32, #tpu.memory_space<vmem>>, vector<8x256xf32>
    tpu.vector_store %arg3[%c0_2, %c0_3], %6 {strides = array<i32>} : memref<8x256xf32, #tpu.memory_space<vmem>>, vector<8x256xf32>,
    return
  }
  func.func @transform_0(%arg0: i32) -> i32 {
    %c0_i32 = arith.constant 0 : i32
    %c0_i32_0 = arith.constant 0 : i32
    return %c0_i32 : i32
  }
  func.func @transform_1(%arg0: i32) -> (i32, i32) {
    %c0_i32 = arith.constant 0 : i32
    %c0_i32_0 = arith.constant 0 : i32
    return %arg0, %c0_i32 : i32, i32
  }
  func.func @transform_2(%arg0: i32) -> (i32, i32) {
    %c0_i32 = arith.constant 0 : i32
    %c0_i32_0 = arith.constant 0 : i32
    return %arg0, %c0_i32 : i32, i32
  }
}

</mosaic_0001>

<llo_original>
// kernel: tpu_custom_call.1
$region0: #{tpu_custom_call.1}
  #allocation0 [shape = 'u32[]', space=smem, size = 0x4, offset = 0x4, fixed_abs, tag = 'smem constant byte address 0x4 - core index']
  #allocation1 [shape = 'u32[144,128]{1,0:T(1,128)}', space=vmem, size = 0x12000, scoped, tag = 'internal scratch']
  %s0 = inlined_call_operand.hbm [shape: f32[2], index: 0, kind: input, shape index: {}]
  %s1 = inlined_call_operand.hbm [shape: f32[8,256], index: 1, kind: input, shape index: {}]
  %s2 = inlined_call_operand.hbm [shape: f32[8,256], index: 2, kind: output, shape index: {}]
  %s3 = sld [smem:[#allocation0]]
  $region26: #{tpu_custom_call.1} parent=0
    _
  %s5 = ssub.s32 1, %s3
  %s6 = scalar_select 0, %s5, %s3
  $region1: #{tpu_custom_call.1} parent=0
    #allocation2 [shape = 'u8[512]{0}', space=smem, size = 0x200, scoped, tag = 'input window, operand 0, single buffered']
    #allocation3 [shape = 's32[1]{0}', space=sflag, size = 0x4, scoped, tag = 'scoped memory for tpu_custom_call.1']
    #allocation4 [shape = 's32[1]{0}', space=sflag, size = 0x4, scoped, tag = 'scoped memory for tpu_custom_call.1']
    #allocation5 [shape = 's32[1]{0}', space=sflag, size = 0x4, scoped, tag = 'scoped memory for tpu_custom_call.1']
    #allocation6 [shape = 'u8[8192]{0}', space=vmem, size = 0x2000, scoped, tag = 'input window, operand 1, single buffered']
    #allocation7 [shape = 'u8[8192]{0}', space=vmem, size = 0x2000, scoped, tag = 'output window, operand 0, single buffered']
    %7 = vsyncpa [#allocation5], 0
    %8 = vsyncpa [#allocation3], 0
    %9 = vsyncpa [#allocation4], 0
    // Predicated region
    $region2: #{tpu_custom_call.1} parent=1 // pred_check
      _
    $region3: #{tpu_custom_call.1} parent=1 // pred_check_branch
      %11 = sbr.rel (0) target = $region5
    $region4: #{tpu_custom_call.1} parent=1 // pred_region
      %s13 = ssub.s32 16, 16
      %14 = vsyncadd [#allocation5], %s13
      %17 = dma.hbm_to_smem %s0, 16, [#allocation2], [#allocation5]
    $region5: #{tpu_custom_call.1} parent=1 // pred_fallthru
      _
    // Predicated region
    $region6: #{tpu_custom_call.1} parent=1 // pred_check
      _
    $region7: #{tpu_custom_call.1} parent=1 // pred_check_branch
      %19 = sbr.rel (0) target = $region9
    $region8: #{tpu_custom_call.1} parent=1 // pred_region
      %s21 = ssub.s32 256, 256
      %22 = vsyncadd [#allocation3], %s21
      %s24 = sshll.u32 [#allocation6], 4
      %s25 = int_to_ptr.vmem [resolvable:$true] %s24
      %27 = dma.hbm_to_vmem [thread:$0]  %s1, 256, %s25, [#allocation3]
    $region9: #{tpu_custom_call.1} parent=1 // pred_fallthru
      _
    // Predicated region
    $region10: #{tpu_custom_call.1} parent=1 // pred_check
      _
    $region11: #{tpu_custom_call.1} parent=1 // pred_check_branch
      %29 = sbr.rel (0) target = $region13
    $region12: #{tpu_custom_call.1} parent=1 // pred_region
      %30 = dma.done [#allocation5], 16
    $region13: #{tpu_custom_call.1} parent=1 // pred_fallthru
      _
    // Predicated region
    $region14: #{tpu_custom_call.1} parent=1 // pred_check
      _
    $region15: #{tpu_custom_call.1} parent=1 // pred_check_branch
      %32 = sbr.rel (0) target = $region17
    $region16: #{tpu_custom_call.1} parent=1 // pred_region
      %33 = dma.done [#allocation3], 256
    $region17: #{tpu_custom_call.1} parent=1 // pred_fallthru
      _
    %34 = sfence
    %s35 = sld [smem:[#allocation2]]
    %s36 = sld [smem:[#allocation2 + $0x1]]
    %v37 = vld [vmem:[#allocation6] sm:$0xff]
    %v38 = vld [vmem:[#allocation6 + $0x8] sm:$0xff]
    %v39 = vstv %s35
    %v40 = vsub.f32 %v37, %v39
    %v41 = vsub.f32 %v38, %v39
    %v42 = vstv %s36
    %v43 = vmul.f32 %v40, %v42
    %v44 = vmul.f32 %v41, %v42
    %45 = vst [vmem:[#allocation7] sm:$0xff] %v43
    %46 = vst [vmem:[#allocation7 + $0x8] sm:$0xff] %v44
    // Predicated region
    $region18: #{tpu_custom_call.1} parent=1 // pred_check
      _
    $region19: #{tpu_custom_call.1} parent=1 // pred_check_branch
      %48 = sbr.rel (0) target = $region21
    $region20: #{tpu_custom_call.1} parent=1 // pred_region
      %s50 = ssub.s32 256, 256
      %51 = vsyncadd [#allocation4], %s50
      %s53 = sshll.u32 [#allocation7], 4
      %s54 = int_to_ptr.vmem [resolvable:$true] %s53
      %56 = dma.vmem_to_hbm [thread:$0]  %s54, 256, %s2, [#allocation4]
    $region21: #{tpu_custom_call.1} parent=1 // pred_fallthru
      _
    // Predicated region
    $region22: #{tpu_custom_call.1} parent=1 // pred_check
      _
    $region23: #{tpu_custom_call.1} parent=1 // pred_check_branch
      %58 = sbr.rel (0) target = $region25
    $region24: #{tpu_custom_call.1} parent=1 // pred_region
      %59 = dma.done [#allocation4], 256
    $region25: #{tpu_custom_call.1} parent=1 // pred_fallthru
      _
    %60 = vsyncpa [#allocation3], 1
    %61 = vsyncpa [#allocation4], 1
    %62 = vsyncpa [#allocation5], 1

</llo_original>
